<compile_context>
chip_gen: v5e
topology: v5e:2x2
jax: 0.10.0
libtpu: 0.0.40
codegen_flags: <defaults>
</compile_context>

<pallas_src>
import functools

import numpy as np
import jax
import jax.numpy as jnp
from jax import lax
from jax.experimental import pallas as pl
from jax.experimental.pallas import tpu as pltpu


def _head_kernel(x_ref, wq_ref, wk_ref, wv_ref, out_ref, attw_ref, *,
                 d_out, compute_dtype):
    # x_ref:    (Bb, T, d_in)    batch tile (shared by every head)
    # w*_ref:   (1, d_in, d_out) this head's Linear weight (pre-transposed, bias=False)
    # out_ref:  (Bb, 1, T, d_out) this head's attention output
    # attw_ref: (Bb, 1, T, T)    this head's attention weights
    Bb, T, d_in = x_ref.shape
    cd = compute_dtype

    # Fold batch into the MXU M dim: one (Bb*T, d_in) @ (d_in, d_out) matmul per weight.
    x2d = x_ref[...].reshape(Bb * T, d_in).astype(cd)
    wq = wq_ref[0].astype(cd)
    wk = wk_ref[0].astype(cd)
    wv = wv_ref[0].astype(cd)

    scale = 1.0 / jnp.sqrt(jnp.float32(d_out))
    q = (jnp.dot(x2d, wq, preferred_element_type=jnp.float32) * scale
         ).reshape(Bb, T, d_out)                                   # softmax scale folded into q
    k = jnp.dot(x2d, wk, preferred_element_type=jnp.float32).reshape(Bb, T, d_out)
    v = jnp.dot(x2d, wv, preferred_element_type=jnp.float32).reshape(Bb, T, d_out)

    # scores = q @ k^T, batched over the Bb tile (MXU, f32 accumulate).
    s = jnp.einsum("bqd,bkd->bqk", q.astype(cd), k.astype(cd),
                   preferred_element_type=jnp.float32)             # (Bb, T, T)

    # In-kernel mask, faithful to the module: torch.tril(ones, diagonal=1).bool() -> -inf.
    # (This masks the lower triangle incl. the first superdiagonal, so the last rows are
    #  fully masked and softmax yields NaN there — exactly like the PyTorch code.)
    row = lax.broadcasted_iota(jnp.int32, (T, T), 0)
    col = lax.broadcasted_iota(jnp.int32, (T, T), 1)
    s = jnp.where(col <= row + 1, -jnp.inf, s)

    # softmax(dim=-1). Exact normalization (single divide on the (Bb,T,1) denominator)
    # so the returned weights sum exactly to 1 per row.
    m = jnp.max(s, axis=-1, keepdims=True)
    e = jnp.exp(s - m)
    w = e * (1.0 / jnp.sum(e, axis=-1, keepdims=True))

    # TODO(synk): nn.Dropout treated as identity (p=0 / eval mode); stochastic dropout
    # would use pltpu.prng_seed + pltpu.prng_random_bits on `w`.

    attw_ref[...] = w.reshape(Bb, 1, T, T).astype(attw_ref.dtype)
    out = jnp.einsum("bqk,bkd->bqd", w.astype(cd), v.astype(cd),
                     preferred_element_type=jnp.float32)           # (Bb, T, d_out)
    out_ref[...] = out.reshape(Bb, 1, T, d_out).astype(out_ref.dtype)


def _pick_batch_tile(batch, seq, target_rows=256):
    """Largest divisor Bb of `batch` with Bb*seq <= target_rows (fills MXU M rows)."""
    bb = 1
    for cand in range(1, batch + 1):
        if batch % cand == 0 and cand * seq <= target_rows:
            bb = cand
    return bb


def multi_head_attention_wrapper(x, wq, wk, wv, *,
                                 compute_dtype=None, attw_dtype=jnp.float32):
    """x: (B, T, d_in); wq/wk/wv: (H, d_in, d_out) per-head Linear weights (pre-transposed).

    Returns (concatenated_output (B, T, H*d_out), stacked_weights (B, H, T, T)),
    matching MultiHeadAttentionWrapper.forward.
      compute_dtype: dtype of MXU matmul inputs (f32 accumulate). bf16 ~2x MXU on v6e/v7x.
      attw_dtype:    dtype of the returned attention weights (bf16 halves VMEM/HBM cost).
    """
    B, T, d_in = x.shape
    H, _, d_out = wq.shape
    if compute_dtype is None:
        compute_dtype = x.dtype

    Bb = _pick_batch_tile(B, T)
    nb = B // Bb

    kernel = functools.partial(_head_kernel, d_out=d_out, compute_dtype=compute_dtype)

    # Rough per-step VMEM need (double-buffered blocks) with generous headroom; keeps
    # v5e's 16 MiB / v6e-v7x's 32 MiB default scoped limits from becoming the constraint.
    block_bytes = 4 * (Bb * T * d_in + 3 * d_in * d_out + Bb * T * d_out + Bb * T * T)
    vmem_limit = int(min(max(8 * block_bytes, 4 << 20), 48 << 20))

    # TODO(synk): for large T, add a query-tile grid axis (flash-style online softmax)
    # so the (Bb, 1, tq, T) attw block stays inside v7x's 64 MiB VMEM.
    out_heads, attw = pl.pallas_call(
        kernel,
        out_shape=(
            jax.ShapeDtypeStruct((B, H, T, d_out), x.dtype),
            jax.ShapeDtypeStruct((B, H, T, T), attw_dtype),
        ),
        grid_spec=pltpu.PrefetchScalarGridSpec(
            num_scalar_prefetch=0,
            grid=(nb, H),
            in_specs=[
                pl.BlockSpec((Bb, T, d_in), lambda b, h: (b, 0, 0)),
                pl.BlockSpec((1, d_in, d_out), lambda b, h: (h, 0, 0)),
                pl.BlockSpec((1, d_in, d_out), lambda b, h: (h, 0, 0)),
                pl.BlockSpec((1, d_in, d_out), lambda b, h: (h, 0, 0)),
            ],
            out_specs=(
                pl.BlockSpec((Bb, 1, T, d_out), lambda b, h: (b, h, 0, 0)),
                pl.BlockSpec((Bb, 1, T, T), lambda b, h: (b, h, 0, 0)),
            ),
        ),
        compiler_params=pltpu.CompilerParams(
            dimension_semantics=("parallel", "parallel"),
            vmem_limit_bytes=vmem_limit,
        ),
    )(x, wq, wk, wv)

    # torch.cat(att_outputs, dim=-1): cheap layout plumbing (transpose+reshape) on the
    # small (B,H,T,d_out) tensor; the dominant H*T^2 attw tensor is emitted directly.
    out = out_heads.transpose(0, 2, 1, 3).reshape(B, T, H * d_out)
    return out, attw


def _reference(x, wq, wk, wv):
    T = x.shape[1]
    mask = jnp.tril(jnp.ones((T, T), jnp.float32), k=1)   # same buffer as the module
    q = jnp.einsum("btd,hde->bhte", x, wq)
    k = jnp.einsum("btd,hde->bhte", x, wk)
    v = jnp.einsum("btd,hde->bhte", x, wv)
    s = jnp.einsum("bhqe,bhke->bhqk", q, k)
    s = jnp.where(mask[None, None] != 0, -jnp.inf, s)
    s = s / jnp.sqrt(jnp.float32(q.shape[-1]))
    m = jnp.max(s, axis=-1, keepdims=True)
    e = jnp.exp(s - m)
    w = e / jnp.sum(e, axis=-1, keepdims=True)
    o = jnp.einsum("bhqk,bhke->bhqe", w, v)
    B, H, T_, d_out = o.shape
    return o.transpose(0, 2, 1, 3).reshape(B, T_, H * d_out), w


if __name__ == "__main__":
    # Small shapes consistent with the module
    B, T, d_in, d_out, H = 2, 8, 32, 16, 4

    key = jax.random.PRNGKey(0)
    kx, kq, kk, kv = jax.random.split(key, 4)
    x = jax.random.normal(kx, (B, T, d_in), dtype=jnp.float32)
    # Deterministic per-head Linear weights (bias=False), stored transposed (d_in, d_out)
    scale = 1.0 / np.sqrt(d_in)
    wq = jax.random.uniform(kq, (H, d_in, d_out), jnp.float32, -scale, scale)
    wk = jax.random.uniform(kk, (H, d_in, d_out), jnp.float32, -scale, scale)
    wv = jax.random.uniform(kv, (H, d_in, d_out), jnp.float32, -scale, scale)

    out, attw = multi_head_attention_wrapper(x, wq, wk, wv)
    out = jax.block_until_ready(out)
    attw = jax.block_until_ready(attw)

    ref_out, ref_w = _reference(x, wq, wk, wv)
    assert out.shape == (B, T, H * d_out)
    assert attw.shape == (B, H, T, T)
    # Fully-masked rows are NaN in both the PyTorch module and this kernel (equal_nan).
    assert np.allclose(np.asarray(out), np.asarray(ref_out),
                       atol=1e-3, rtol=1e-3, equal_nan=True)
    assert np.allclose(np.asarray(attw), np.asarray(ref_w),
                       atol=1e-3, rtol=1e-3, equal_nan=True)

    # Smoke-test the reduced-precision fast path (bf16 MXU inputs, bf16 attw output).
    out_bf16, attw_bf16 = multi_head_attention_wrapper(
        x, wq, wk, wv, compute_dtype=jnp.bfloat16, attw_dtype=jnp.bfloat16)
    out_bf16 = jax.block_until_ready(out_bf16)
    attw_bf16 = jax.block_until_ready(attw_bf16)
    assert out_bf16.shape == (B, T, H * d_out)
    assert attw_bf16.shape == (B, H, T, T)

    print("KERNEL_OK")
</pallas_src>

<mosaic_0001>
module attributes {stable_mosaic.version = 11 : i64} {
  func.func @_head_kernel(%arg0: i32, %arg1: i32, %arg2: memref<2x8x32xf32, #tpu.memory_space<vmem>>, %arg3: memref<1x32x16xf32, #tpu.memory_space<vmem>>, %arg4: memref<1x32x16xf32, #tpu.memory_space<vmem>>, %arg5: memref<1x32x16xf32, #tpu.memory_space<vmem>>, %arg6: memref<2x1x8x16xf32, #tpu.memory_space<vmem>>, %arg7: memref<2x1x8x8xf32, #tpu.memory_space<vmem>>) attributes {dimension_semantics = [#tpu.dimension_semantics<parallel>, #tpu.dimension_semantics<parallel>], iteration_bounds = array<i64: 1, 4>, scalar_prefetch = 0 : i64, scratch_operands = 0 : i64, tpu.core_type = #tpu.core_type<tc>, window_params = [{transform_indices = @transform_0, window_bounds = array<i64: 2, 8, 32>}, {transform_indices = @transform_1, window_bounds = array<i64: 1, 32, 16>}, {transform_indices = @transform_2, window_bounds = array<i64: 1, 32, 16>}, {transform_indices = @transform_3, window_bounds = array<i64: 1, 32, 16>}, {transform_indices = @transform_4, window_bounds = array<i64: 2, 1, 8, 16>}, {transform_indices = @transform_5, window_bounds = array<i64: 2, 1, 8, 8>}]} {
    %c0 = arith.constant 0 : index
    %c0_0 = arith.constant 0 : index
    %c0_1 = arith.constant 0 : index
    %0 = vector.load %arg2[%c0, %c0_0, %c0_1] : memref<2x8x32xf32, #tpu.memory_space<vmem>>, vector<2x8x32xf32>
    %1 = vector.shape_cast %0 : vector<2x8x32xf32> to vector<16x32xf32>
    %c0_2 = arith.constant 0 : index
    %c0_3 = arith.constant 0 : index
    %c0_4 = arith.constant 0 : index
    %2 = vector.load %arg3[%c0_2, %c0_3, %c0_4] : memref<1x32x16xf32, #tpu.memory_space<vmem>>, vector<1x32x16xf32>
    %3 = vector.shape_cast %2 : vector<1x32x16xf32> to vector<32x16xf32>
    %c0_5 = arith.constant 0 : index
    %c0_6 = arith.constant 0 : index
    %c0_7 = arith.constant 0 : index
    %4 = vector.load %arg4[%c0_5, %c0_6, %c0_7] : memref<1x32x16xf32, #tpu.memory_space<vmem>>, vector<1x32x16xf32>
    %5 = vector.shape_cast %4 : vector<1x32x16xf32> to vector<32x16xf32>
    %c0_8 = arith.constant 0 : index
    %c0_9 = arith.constant 0 : index
    %c0_10 = arith.constant 0 : index
    %6 = vector.load %arg5[%c0_8, %c0_9, %c0_10] : memref<1x32x16xf32, #tpu.memory_space<vmem>>, vector<1x32x16xf32>
    %7 = vector.shape_cast %6 : vector<1x32x16xf32> to vector<32x16xf32>
    %cst = arith.constant 1.600000e+01 : f32
    %8 = math.sqrt %cst : f32
    %cst_11 = arith.constant 1.000000e+00 : f32
    %9 = arith.divf %cst_11, %8 : f32
    %cst_12 = arith.constant dense<0.000000e+00> : vector<16x16xf32>
    %10 = tpu.matmul %1, %3, %cst_12 {dimension_numbers = #tpu.dot_dimension_numbers<[1], [0], [0], [1], [0, 0, 1, 1], [], []>} : vector<16x32xf32>, vector<32x16xf32>, vector<16x16xf32> -> vector<16x16xf32>
    %11 = vector.broadcast %9 : f32 to vector<16x16xf32>
    %12 = arith.mulf %10, %11 : vector<16x16xf32>
    %13 = vector.shape_cast %12 : vector<16x16xf32> to vector<2x8x16xf32>
    %cst_13 = arith.constant dense<0.000000e+00> : vector<16x16xf32>
    %14 = tpu.matmul %1, %5, %cst_13 {dimension_numbers = #tpu.dot_dimension_numbers<[1], [0], [0], [1], [0, 0, 1, 1], [], []>} : vector<16x32xf32>, vector<32x16xf32>, vector<16x16xf32> -> vector<16x16xf32>
    %15 = vector.shape_cast %14 : vector<16x16xf32> to vector<2x8x16xf32>
    %cst_14 = arith.constant dense<0.000000e+00> : vector<16x16xf32>
    %16 = tpu.matmul %1, %7, %cst_14 {dimension_numbers = #tpu.dot_dimension_numbers<[1], [0], [0], [1], [0, 0, 1, 1], [], []>} : vector<16x32xf32>, vector<32x16xf32>, vector<16x16xf32> -> vector<16x16xf32>
    %17 = vector.shape_cast %16 : vector<16x16xf32> to vector<2x8x16xf32>
    "tpu.trace_start"() <{level = 10 : i32, message = "bqd,bkd->bqk"}> : () -> ()
    %cst_15 = arith.constant dense<0.000000e+00> : vector<2x8x8xf32>
    %18 = tpu.matmul %13, %15, %cst_15 {dimension_numbers = #tpu.dot_dimension_numbers<[2], [2], [1], [1], [0, 0, 0, 1, 1, 1], [0], [0]>} : vector<2x8x16xf32>, vector<2x8x16xf32>, vector<2x8x8xf32> -> vector<2x8x8xf32>
    "tpu.trace_stop"() : () -> ()
    %19 = tpu.iota {dimensions = array<i32: 0>} : vector<8x8xi32>
    %20 = tpu.iota {dimensions = array<i32: 1>} : vector<8x8xi32>
    %c1_i32 = arith.constant 1 : i32
    %21 = vector.broadcast %c1_i32 : i32 to vector<8x8xi32>
    %22 = arith.addi %19, %21 : vector<8x8xi32>
    %23 = arith.cmpi sle, %20, %22 : vector<8x8xi32>
    %cst_16 = arith.constant 0xFF800000 : f32
    %24 = vector.shape_cast %23 : vector<8x8xi1> to vector<1x8x8xi1>
    %25 = vector.broadcast %24 : vector<1x8x8xi1> to vector<2x8x8xi1>
    %26 = vector.broadcast %cst_16 : f32 to vector<2x8x8xf32>
    %27 = arith.select %25, %26, %18 : vector<2x8x8xi1>, vector<2x8x8xf32>
    %cst_17 = arith.constant dense<0xFF800000> : vector<2x8xf32>
    %28 = vector.multi_reduction <maximumf>, %27, %cst_17 [2] : vector<2x8x8xf32> to vector<2x8xf32>
    %29 = vector.shape_cast %28 : vector<2x8xf32> to vector<2x8x1xf32>
    %30 = vector.broadcast %29 : vector<2x8x1xf32> to vector<2x8x8xf32>
    %31 = arith.subf %27, %30 : vector<2x8x8xf32>
    %32 = math.exp %31 : vector<2x8x8xf32>
    %cst_18 = arith.constant dense<0.000000e+00> : vector<2x8xf32>
    %33 = vector.multi_reduction <add>, %32, %cst_18 [2] : vector<2x8x8xf32> to vector<2x8xf32>
    %34 = vector.shape_cast %33 : vector<2x8xf32> to vector<2x8x1xf32>
    %cst_19 = arith.constant 1.000000e+00 : f32
    %35 = vector.broadcast %cst_19 : f32 to vector<2x8x1xf32>
    %36 = arith.divf %35, %34 : vector<2x8x1xf32>
    %37 = vector.broadcast %36 : vector<2x8x1xf32> to vector<2x8x8xf32>
    %38 = arith.mulf %32, %37 : vector<2x8x8xf32>
    %39 = vector.shape_cast %38 : vector<2x8x8xf32> to vector<2x1x8x8xf32>
    %c0_20 = arith.constant 0 : index
    %c0_21 = arith.constant 0 : index
    %c0_22 = arith.constant 0 : index
    %c0_23 = arith.constant 0 : index
    %40 = vector.load %arg7[%c0_20, %c0_21, %c0_22, %c0_23] : memref<2x1x8x8xf32, #tpu.memory_space<vmem>>, vector<2x1x8x8xf32>
    tpu.vector_store %arg7[%c0_20, %c0_21, %c0_22, %c0_23], %39 {strides = array<i32>} : memref<2x1x8x8xf32, #tpu.memory_space<vmem>>, vector<2x1x8x8xf32>,
    "tpu.trace_start"() <{level = 10 : i32, message = "bqk,bkd->bqd"}> : () -> ()
    %cst_24 = arith.constant dense<0.000000e+00> : vector<2x8x16xf32>
    %41 = tpu.matmul %38, %17, %cst_24 {dimension_numbers = #tpu.dot_dimension_numbers<[2], [1], [1], [2], [0, 0, 0, 1, 1, 2], [0], [0]>} : vector<2x8x8xf32>, vector<2x8x16xf32>, vector<2x8x16xf32> -> vector<2x8x16xf32>
    "tpu.trace_stop"() : () -> ()
    %42 = vector.shape_cast %41 : vector<2x8x16xf32> to vector<2x1x8x16xf32>
    %c0_25 = arith.constant 0 : index
    %c0_26 = arith.constant 0 : index
    %c0_27 = arith.constant 0 : index
    %c0_28 = arith.constant 0 : index
    %43 = vector.load %arg6[%c0_25, %c0_26, %c0_27, %c0_28] : memref<2x1x8x16xf32, #tpu.memory_space<vmem>>, vector<2x1x8x16xf32>
    tpu.vector_store %arg6[%c0_25, %c0_26, %c0_27, %c0_28], %42 {strides = array<i32>} : memref<2x1x8x16xf32, #tpu.memory_space<vmem>>, vector<2x1x8x16xf32>,
    return
  }
  func.func @transform_0(%arg0: i32, %arg1: i32) -> (i32, i32, i32) {
    %c0_i32 = arith.constant 0 : i32
    %c0_i32_0 = arith.constant 0 : i32
    %c0_i32_1 = arith.constant 0 : i32
    return %arg0, %c0_i32, %c0_i32_0 : i32, i32, i32
  }
  func.func @transform_1(%arg0: i32, %arg1: i32) -> (i32, i32, i32) {
    %c0_i32 = arith.constant 0 : i32
    %c0_i32_0 = arith.constant 0 : i32
    %c0_i32_1 = arith.constant 0 : i32
    return %arg1, %c0_i32, %c0_i32_0 : i32, i32, i32
  }
  func.func @transform_2(%arg0: i32, %arg1: i32) -> (i32, i32, i32) {
    %c0_i32 = arith.constant 0 : i32
    %c0_i32_0 = arith.constant 0 : i32
    %c0_i32_1 = arith.constant 0 : i32
    return %arg1, %c0_i32, %c0_i32_0 : i32, i32, i32
  }
  func.func @transform_3(%arg0: i32, %arg1: i32) -> (i32, i32, i32) {
    %c0_i32 = arith.constant 0 : i32
    %c0_i32_0 = arith.constant 0 : i32
    %c0_i32_1 = arith.constant 0 : i32
    return %arg1, %c0_i32, %c0_i32_0 : i32, i32, i32
  }
  func.func @transform_4(%arg0: i32, %arg1: i32) -> (i32, i32, i32, i32) {
    %c0_i32 = arith.constant 0 : i32
    %c0_i32_0 = arith.constant 0 : i32
    %c0_i32_1 = arith.constant 0 : i32
    return %arg0, %arg1, %c0_i32, %c0_i32_0 : i32, i32, i32, i32
  }
  func.func @transform_5(%arg0: i32, %arg1: i32) -> (i32, i32, i32, i32) {
    %c0_i32 = arith.constant 0 : i32
    %c0_i32_0 = arith.constant 0 : i32
    %c0_i32_1 = arith.constant 0 : i32
    return %arg0, %arg1, %c0_i32, %c0_i32_0 : i32, i32, i32, i32
  }
}

</mosaic_0001>

<llo_original>
// kernel: tpu_custom_call.1
$region0: #{tpu_custom_call.1}
  #allocation0 [shape = 'u32[]', space=smem, size = 0x4, offset = 0x4, fixed_abs, tag = 'smem constant byte address 0x4 - core index']
  #allocation1 [shape = 'u32[72,128]{1,0:T(1,128)}', space=vmem, size = 0x9000, scoped, tag = 'internal scratch']
  %s0 = inlined_call_operand.vmem [shape: f32[2,8,32], index: 0, kind: input, shape index: {}]
  %s1 = inlined_call_operand.vmem [shape: f32[4,32,16], index: 1, kind: input, shape index: {}]
  %s2 = inlined_call_operand.vmem [shape: f32[4,32,16], index: 2, kind: input, shape index: {}]
  %s3 = inlined_call_operand.vmem [shape: f32[4,32,16], index: 3, kind: input, shape index: {}]
  %s4 = inlined_call_operand.hbm [shape: f32[2,4,8,16], index: 4, kind: output, shape index: {0}]
  %s5 = inlined_call_operand.hbm [shape: f32[2,4,8,8], index: 5, kind: output, shape index: {1}]
  %6 = xla_tuple %s4, %s5
  %s7 = sld [smem:[#allocation0]]
  $region57: #{tpu_custom_call.1} parent=0
    _
  %s9 = ssub.s32 1, %s7
  %s10 = scalar_select 0, %s9, %s7
  $region1: #{tpu_custom_call.1} parent=0
    #allocation2 [shape = 'u8[16384]{0}', space=vmem, size = 0x4000, scoped, tag = 'output window, operand 0']
    #allocation3 [shape = 's32[2]{0}', space=sflag, size = 0x8, scoped, tag = 'scoped memory for tpu_custom_call.1']
    #allocation4 [shape = 'u8[16384]{0}', space=vmem, size = 0x4000, scoped, tag = 'output window, operand 1']
    #allocation5 [shape = 's32[2]{0}', space=sflag, size = 0x8, scoped, tag = 'scoped memory for tpu_custom_call.1']
    %11 = vsyncpa [#allocation3], 0
    %s12 = scalar_lea.sflag [#allocation3], 1
    %13 = vsyncpa %s12, 0
    %14 = vsyncpa [#allocation5], 0
    %s15 = scalar_lea.sflag [#allocation5], 1
    %16 = vsyncpa %s15, 0
    loop: start=0, step=1, limit=6
    $region2: #{tpu_custom_call.1} parent=1 // loop_pre_header
      _
    $region3: #{tpu_custom_call.1} parent=1 // loop_header
      %s18 = sphi 0, %s22
      %p19 = scmp.ge.s32.totalorder %s18, 6
      %s25 = sphi 0, %s37
      %s26 = sphi 0, %s33
      %s27 = sphi 0, %s25
      %s28 = sphi 0, %s26
      %s29 = sphi 0, %s27
      %s30 = sphi 0, %s28
      %s40 = sphi 0, %s42
      %s43 = sphi 0, %s40
      %s44 = sphi 0, %s43
      %s60 = sphi 0, %s44
      %s66 = sphi 0, %s68
      %s69 = sphi 0, %s66
      %s70 = sphi 0, %s69
      %s86 = sphi 0, %s70
      %s92 = sphi 0, %s94
      %s95 = sphi 0, %s92
      %s96 = sphi 0, %s95
      %s112 = sphi 0, %s96
      %s118 = sphi 0, %s120
      %s121 = sphi 0, %s118
      %s122 = sphi 0, %s121
      %s138 = sphi 0, %s122
      %s146 = sphi 0, %s148
      %s149 = sphi 0, %s146
      %s150 = sphi 0, %s149
      %s166 = sphi 0, %s150
      %s174 = sphi 0, %s176
      %s177 = sphi 0, %s174
      %s178 = sphi 0, %s177
      %s194 = sphi 0, %s178
    $region4: #{tpu_custom_call.1} parent=1 // loop_header_branch
      %21 = sbr.rel (%p19) target = $region8
    $region5: #{tpu_custom_call.1} parent=1 // loop_body
      %s23 = ssub.s32 %s18, 1
      %s24 = ssub.s32 %s18, 2
      %s31 = sadd.s32 1, %s26
      %p32 = scmp.ge.s32.totalorder %s31, 4
      %s33 = scalar_select %p32, 0, %s31
      %s34 = sadd.s32 1, %s25
      %s35 = scalar_select %p32, %s34, %s25
      %p36 = scmp.ge.s32.totalorder %s35, 1
      %s37 = scalar_select %p36, 0, %s35
      %s38 = ssub.s32 %s25, %s37
      %p39 = scmp.eq.s32.totalorder %s38, 0
      %s41 = sadd.s32 %s40, 1
      %s42 = scalar_select %p39, %s40, %s41
      %p45 = pneg %p39
      %p46 = scmp.eq.s32.totalorder %s18, 3
      %p47 = por %p45, %p46
      %p48 = scmp.ne.s32.totalorder %s40, %s43
      %p49 = scmp.eq.s32.totalorder %s18, 0
      %p50 = por %p48, %p49
      %p51 = scmp.ne.s32.totalorder %s40, %s43
      %p52 = scmp.eq.s32.totalorder %s23, 3
      %p53 = por %p51, %p52
      %p54 = scmp.ne.s32.totalorder %s43, %s44
      %p55 = scmp.eq.s32.totalorder %s23, 0
      %p56 = por %p54, %p55
      %p57 = scmp.ne.s32.totalorder %s43, %s44
      %p58 = scmp.eq.s32.totalorder %s24, 3
      %p59 = por %p57, %p58
      %p61 = scmp.ne.s32.totalorder %s44, %s60
      %p62 = scmp.eq.s32.totalorder %s24, 0
      %p63 = por %p61, %p62
      %s64 = ssub.s32 %s26, %s33
      %p65 = scmp.eq.s32.totalorder %s64, 0
      %s67 = sadd.s32 %s66, 1
      %s68 = scalar_select %p65, %s66, %s67
      %p71 = pneg %p65
      %p72 = scmp.eq.s32.totalorder %s18, 3
      %p73 = por %p71, %p72
      %p74 = scmp.ne.s32.totalorder %s66, %s69
      %p75 = scmp.eq.s32.totalorder %s18, 0
      %p76 = por %p74, %p75
      %p77 = scmp.ne.s32.totalorder %s66, %s69
      %p78 = scmp.eq.s32.totalorder %s23, 3
      %p79 = por %p77, %p78
      %p80 = scmp.ne.s32.totalorder %s69, %s70
      %p81 = scmp.eq.s32.totalorder %s23, 0
      %p82 = por %p80, %p81
      %p83 = scmp.ne.s32.totalorder %s69, %s70
      %p84 = scmp.eq.s32.totalorder %s24, 3
      %p85 = por %p83, %p84
      %p87 = scmp.ne.s32.totalorder %s70, %s86
      %p88 = scmp.eq.s32.totalorder %s24, 0
      %p89 = por %p87, %p88
      %s90 = ssub.s32 %s26, %s33
      %p91 = scmp.eq.s32.totalorder %s90, 0
      %s93 = sadd.s32 %s92, 1
      %s94 = scalar_select %p91, %s92, %s93
      %p97 = pneg %p91
      %p98 = scmp.eq.s32.totalorder %s18, 3
      %p99 = por %p97, %p98
      %p100 = scmp.ne.s32.totalorder %s92, %s95
      %p101 = scmp.eq.s32.totalorder %s18, 0
      %p102 = por %p100, %p101
      %p103 = scmp.ne.s32.totalorder %s92, %s95
      %p104 = scmp.eq.s32.totalorder %s23, 3
      %p105 = por %p103, %p104
      %p106 = scmp.ne.s32.totalorder %s95, %s96
      %p107 = scmp.eq.s32.totalorder %s23, 0
      %p108 = por %p106, %p107
      %p109 = scmp.ne.s32.totalorder %s95, %s96
      %p110 = scmp.eq.s32.totalorder %s24, 3
      %p111 = por %p109, %p110
      %p113 = scmp.ne.s32.totalorder %s96, %s112
      %p114 = scmp.eq.s32.totalorder %s24, 0
      %p115 = por %p113, %p114
      %s116 = ssub.s32 %s26, %s33
      %p117 = scmp.eq.s32.totalorder %s116, 0
      %s119 = sadd.s32 %s118, 1
      %s120 = scalar_select %p117, %s118, %s119
      %p123 = pneg %p117
      %p124 = scmp.eq.s32.totalorder %s18, 3
      %p125 = por %p123, %p124
      %p126 = scmp.ne.s32.totalorder %s118, %s121
      %p127 = scmp.eq.s32.totalorder %s18, 0
      %p128 = por %p126, %p127
      %p129 = scmp.ne.s32.totalorder %s118, %s121
      %p130 = scmp.eq.s32.totalorder %s23, 3
      %p131 = por %p129, %p130
      %p132 = scmp.ne.s32.totalorder %s121, %s122
      %p133 = scmp.eq.s32.totalorder %s23, 0
      %p134 = por %p132, %p133
      %p135 = scmp.ne.s32.totalorder %s121, %s122
      %p136 = scmp.eq.s32.totalorder %s24, 3
      %p137 = por %p135, %p136
      %p139 = scmp.ne.s32.totalorder %s122, %s138
      %p140 = scmp.eq.s32.totalorder %s24, 0
      %p141 = por %p139, %p140
      %s142 = ssub.s32 %s25, %s37
      %s143 = ssub.s32 %s26, %s33
      %s144 = sor.u32 %s142, %s143
      %p145 = scmp.eq.s32.totalorder %s144, 0
      %s147 = sadd.s32 %s146, 1
      %s148 = scalar_select %p145, %s146, %s147
      %p151 = pneg %p145
      %p152 = scmp.eq.s32.totalorder %s18, 3
      %p153 = por %p151, %p152
      %p154 = scmp.ne.s32.totalorder %s146, %s149
      %p155 = scmp.eq.s32.totalorder %s18, 0
      %p156 = por %p154, %p155
      %p157 = scmp.ne.s32.totalorder %s146, %s149
      %p158 = scmp.eq.s32.totalorder %s23, 3
      %p159 = por %p157, %p158
      %p160 = scmp.ne.s32.totalorder %s149, %s150
      %p161 = scmp.eq.s32.totalorder %s23, 0
      %p162 = por %p160, %p161
      %p163 = scmp.ne.s32.totalorder %s149, %s150
      %p164 = scmp.eq.s32.totalorder %s24, 3
      %p165 = por %p163, %p164
      %p167 = scmp.ne.s32.totalorder %s150, %s166
      %p168 = scmp.eq.s32.totalorder %s24, 0
      %p169 = por %p167, %p168
      %s170 = ssub.s32 %s25, %s37
      %s171 = ssub.s32 %s26, %s33
      %s172 = sor.u32 %s170, %s171
      %p173 = scmp.eq.s32.totalorder %s172, 0
      %s175 = sadd.s32 %s174, 1
      %s176 = scalar_select %p173, %s174, %s175
      %p179 = pneg %p173
      %p180 = scmp.eq.s32.totalorder %s18, 3
      %p181 = por %p179, %p180
      %p182 = scmp.ne.s32.totalorder %s174, %s177
      %p183 = scmp.eq.s32.totalorder %s18, 0
      %p184 = por %p182, %p183
      %p185 = scmp.ne.s32.totalorder %s174, %s177
      %p186 = scmp.eq.s32.totalorder %s23, 3
      %p187 = por %p185, %p186
      %p188 = scmp.ne.s32.totalorder %s177, %s178
      %p189 = scmp.eq.s32.totalorder %s23, 0
      %p190 = por %p188, %p189
      %p191 = scmp.ne.s32.totalorder %s177, %s178
      %p192 = scmp.eq.s32.totalorder %s24, 3
      %p193 = por %p191, %p192
      %p195 = scmp.ne.s32.totalorder %s178, %s194
      %p196 = scmp.eq.s32.totalorder %s24, 0
      %p197 = por %p195, %p196
      %p198 = scmp.le.s32.totalorder 1, %s18
      %p199 = scmp.lt.s32.totalorder %s18, 5
      %p200 = pnand %p198, %p199
      %p201 = pneg %p200
      // Predicated region
      $region9: #{tpu_custom_call.1} parent=5 // pred_check
        _
      $region10: #{tpu_custom_call.1} parent=5 // pred_check_branch
        %203 = sbr.rel (%p200) target = $region12
      $region11: #{tpu_custom_call.1} parent=5 // pred_region
        %s204 = ssub.s32 %s18, 1
        // Predicated region
        $region13: #{tpu_custom_call.1} parent=11 // pred_check
          %p205 = pneg %p56
        $region14: #{tpu_custom_call.1} parent=11 // pred_check_branch
          %207 = sbr.rel (%p205) target = $region16
        $region15: #{tpu_custom_call.1} parent=11 // pred_region
          %s208 = smul.u32 2, %s27
          %p209 = scmp.lt.s32.totalorder %s208, 1
          %s210 = scalar_select %p209, %s208, 1
          %s211 = smul.addr %s210, 8
          %s212 = scalar_lea.vmem %s0, %s211
          %s213 = smul.u32 2, %s27
        $region16: #{tpu_custom_call.1} parent=11 // pred_fallthru
          _
      $region12: #{tpu_custom_call.1} parent=5 // pred_fallthru
        _
      %p214 = scmp.lt.s32.totalorder %s18, 4
      // Predicated region
      $region17: #{tpu_custom_call.1} parent=5 // pred_check
        %p215 = pneg %p214
      $region18: #{tpu_custom_call.1} parent=5 // pred_check_branch
        %217 = sbr.rel (%p215) target = $region20
      $region19: #{tpu_custom_call.1} parent=5 // pred_region
        // Predicated region
        $region21: #{tpu_custom_call.1} parent=19 // pred_check
          %p218 = pneg %p76
        $region22: #{tpu_custom_call.1} parent=19 // pred_check_branch
          %220 = sbr.rel (%p218) target = $region24
        $region23: #{tpu_custom_call.1} parent=19 // pred_region
          %p221 = scmp.lt.s32.totalorder %s26, 3
          %s222 = scalar_select %p221, %s26, 3
          %s223 = smul.addr %s222, 4
          %s224 = smul.addr %s223, 8
          %s225 = scalar_lea.vmem %s1, %s224
        $region24: #{tpu_custom_call.1} parent=19 // pred_fallthru
          _
        // Predicated region
        $region25: #{tpu_custom_call.1} parent=19 // pred_check
          %p226 = pneg %p102
        $region26: #{tpu_custom_call.1} parent=19 // pred_check_branch
          %228 = sbr.rel (%p226) target = $region28
        $region27: #{tpu_custom_call.1} parent=19 // pred_region
          %p229 = scmp.lt.s32.totalorder %s26, 3
          %s230 = scalar_select %p229, %s26, 3
          %s231 = smul.addr %s230, 4
          %s232 = smul.addr %s231, 8
          %s233 = scalar_lea.vmem %s2, %s232
        $region28: #{tpu_custom_call.1} parent=19 // pred_fallthru
          _
        // Predicated region
        $region29: #{tpu_custom_call.1} parent=19 // pred_check
          %p234 = pneg %p128
        $region30: #{tpu_custom_call.1} parent=19 // pred_check_branch
          %236 = sbr.rel (%p234) target = $region32
        $region31: #{tpu_custom_call.1} parent=19 // pred_region
          %p237 = scmp.lt.s32.totalorder %s26, 3
          %s238 = scalar_select %p237, %s26, 3
          %s239 = smul.addr %s238, 4
          %s240 = smul.addr %s239, 8
          %s241 = scalar_lea.vmem %s3, %s240
        $region32: #{tpu_custom_call.1} parent=19 // pred_fallthru
          _
      $region20: #{tpu_custom_call.1} parent=5 // pred_fallthru
        _
      %p242 = scmp.le.s32.totalorder 1, %s18
      %p243 = scmp.lt.s32.totalorder %s18, 5
      %p244 = pnand %p242, %p243
      %p245 = pneg %p244
      // Predicated region
      $region33: #{tpu_custom_call.1} parent=5 // pred_check
        _
      $region34: #{tpu_custom_call.1} parent=5 // pred_check_branch
        %247 = sbr.rel (%p244) target = $region36
      $region35: #{tpu_custom_call.1} parent=5 // pred_region
        %s248 = ssub.s32 %s18, 1
        %s249 = smul.u32 2, %s27
        %p250 = scmp.lt.s32.totalorder %s249, 1
        %s251 = scalar_select %p250, %s249, 1
        %s252 = smul.addr %s251, 8
        %s253 = scalar_lea.vmem %s0, %s252
        %p254 = pneg %p56
        %p255 = pneg %p53
        %p256 = scmp.lt.s32.totalorder %s28, 3
        %s257 = scalar_select %p256, %s28, 3
        %s258 = smul.addr %s257, 4
        %s259 = smul.addr %s258, 8
        %s260 = scalar_lea.vmem %s1, %s259
        %p261 = pneg %p82
        %p262 = pneg %p79
        %p263 = scmp.lt.s32.totalorder %s28, 3
        %s264 = scalar_select %p263, %s28, 3
        %s265 = smul.addr %s264, 4
        %s266 = smul.addr %s265, 8
        %s267 = scalar_lea.vmem %s2, %s266
        %p268 = pneg %p108
        %p269 = pneg %p105
        %p270 = scmp.lt.s32.totalorder %s28, 3
        %s271 = scalar_select %p270, %s28, 3
        %s272 = smul.addr %s271, 4
        %s273 = smul.addr %s272, 8
        %s274 = scalar_lea.vmem %s3, %s273
        %p275 = pneg %p134
        %p276 = pneg %p131
        %p277 = pneg %p162
        %p278 = pneg %p159
        %s279 = sand.u32 %s149, 1
        %s280 = scalar_lea.sflag [#allocation3], %s279
        %s281 = sand.u32 %s149, 1
        %s282 = smul.addr %s281, 16
        %s283 = scalar_lea.vmem [#allocation2], %s282
        %p284 = pneg %p190
        %p285 = pneg %p187
        %s286 = sand.u32 %s177, 1
        %s287 = scalar_lea.sflag [#allocation5], %s286
        %s288 = sand.u32 %s177, 1
        %s289 = smul.addr %s288, 16
        %s290 = scalar_lea.vmem [#allocation4], %s289
        %s291 = smul.u32 2, %s27
        %p292 = scmp.lt.s32.totalorder %s291, 1
        %s293 = scalar_select %p292, %s291, 1
        %s294 = smul.addr %s293, 8
        %s295 = scalar_lea.vmem %s0, %s294
        %s296 = smul.u32 2, %s27
        %p297 = scmp.lt.s32.totalorder %s28, 3
        %s298 = scalar_select %p297, %s28, 3
        %s299 = smul.addr %s298, 4
        %s300 = smul.addr %s299, 8
        %s301 = scalar_lea.vmem %s1, %s300
        %p302 = scmp.lt.s32.totalorder %s28, 3
        %s303 = scalar_select %p302, %s28, 3
        %s304 = smul.addr %s303, 4
        %s305 = smul.addr %s304, 8
        %s306 = scalar_lea.vmem %s2, %s305
        %p307 = scmp.lt.s32.totalorder %s28, 3
        %s308 = scalar_select %p307, %s28, 3
        %s309 = smul.addr %s308, 4
        %s310 = smul.addr %s309, 8
        %s311 = scalar_lea.vmem %s3, %s310
        %s312 = smul.u32 2, %s27
        %s313 = smul.u32 2, %s27
        %v314 = vld [vmem:[%s295] sm:$0xff]
        %v315 = vld [vmem:[%s295 + $0x8] sm:$0xff]
        %v316 = vld [vmem:[%s301] sm:$0xff]
        %v317 = vld [vmem:[%s301 + $0x8] sm:$0xff]
        %v318 = vld [vmem:[%s301 + $0x10] sm:$0xff]
        %v319 = vld [vmem:[%s301 + $0x18] sm:$0xff]
        %v320 = vld [vmem:[%s306] sm:$0xff]
        %v321 = vld [vmem:[%s306 + $0x8] sm:$0xff]
        %v322 = vld [vmem:[%s306 + $0x10] sm:$0xff]
        %v323 = vld [vmem:[%s306 + $0x18] sm:$0xff]
        %v324 = vld [vmem:[%s311] sm:$0xff]
        %v325 = vld [vmem:[%s311 + $0x8] sm:$0xff]
        %v326 = vld [vmem:[%s311 + $0x10] sm:$0xff]
        %v327 = vld [vmem:[%s311 + $0x18] sm:$0xff]
        %vm328 = vcmask 261120
        %v330 = vsel %vm328, %v314, 0
        %v333 = vsel %vm328, %v315, 0
        %335 = vmatpush.msra.mxu0 0.0
        %336 = vmatpush.msra.mxu0 0.0
        %337 = vmatpush.msra.mxu0 0.0
        %338 = vmatpush.msra.mxu0 0.0
        %339 = vmatpush.msra.mxu0 0.0
        %340 = vmatpush.msra.mxu0 0.0
        %341 = vmatpush.msra.mxu0 0.0
        %342 = vmatpush.msra.mxu0 0.0
        %343 = vmatpush.msra.mxu0 0.0
        %344 = vmatpush.msra.mxu0 0.0
        %345 = vmatpush.msra.mxu0 0.0
        %346 = vmatpush.msra.mxu0 0.0
        %347 = vmatpush.msra.mxu0 %v319
        %348 = vmatpush.msra.mxu0 %v318
        %349 = vmatpush.msra.mxu0 %v317
        %350 = vmatpush.msra.mxu0 %v316
        %351 = vmatmul.f32.gmra.mxu0 %v330
        %v352 = vpop.f32.mrf.mxu0
        %v353 = vadd.f32 0.0, %v352
        %354 = vmatmul.f32.gmra.mxu0 %v333
        %v355 = vpop.f32.mrf.mxu0
        %v356 = vadd.f32 0.0, %v355
        %357 = vdwg.mxu0
        %v358 = vmul.f32 %v353, 0.25
        %v359 = vmul.f32 %v356, 0.25
        %360 = vmatpush.msra.mxu0 0.0
        %361 = vmatpush.msra.mxu0 0.0
        %362 = vmatpush.msra.mxu0 0.0
        %363 = vmatpush.msra.mxu0 0.0
        %364 = vmatpush.msra.mxu0 0.0
        %365 = vmatpush.msra.mxu0 0.0
        %366 = vmatpush.msra.mxu0 0.0
        %367 = vmatpush.msra.mxu0 0.0
        %368 = vmatpush.msra.mxu0 0.0
        %369 = vmatpush.msra.mxu0 0.0
        %370 = vmatpush.msra.mxu0 0.0
        %371 = vmatpush.msra.mxu0 0.0
        %372 = vmatpush.msra.mxu0 %v323
        %373 = vmatpush.msra.mxu0 %v322
        %374 = vmatpush.msra.mxu0 %v321
        %375 = vmatpush.msra.mxu0 %v320
        %376 = vmatmul.f32.gmra.mxu0 %v330
        %v377 = vpop.f32.mrf.mxu0
        %v378 = vadd.f32 0.0, %v377
        %379 = vmatmul.f32.gmra.mxu0 %v333
        %v380 = vpop.f32.mrf.mxu0
        %v381 = vadd.f32 0.0, %v380
        %382 = vdwg.mxu0
        %383 = vmatpush.msra.mxu0 0.0
        %384 = vmatpush.msra.mxu0 0.0
        %385 = vmatpush.msra.mxu0 0.0
        %386 = vmatpush.msra.mxu0 0.0
        %387 = vmatpush.msra.mxu0 0.0
        %388 = vmatpush.msra.mxu0 0.0
        %389 = vmatpush.msra.mxu0 0.0
        %390 = vmatpush.msra.mxu0 0.0
        %391 = vmatpush.msra.mxu0 0.0
        %392 = vmatpush.msra.mxu0 0.0
        %393 = vmatpush.msra.mxu0 0.0
        %394 = vmatpush.msra.mxu0 0.0
        %395 = vmatpush.msra.mxu0 %v327
        %396 = vmatpush.msra.mxu0 %v326
        %397 = vmatpush.msra.mxu0 %v325
        %398 = vmatpush.msra.mxu0 %v324
        %399 = vmatmul.f32.gmra.mxu0 %v330
        %v400 = vpop.f32.mrf.mxu0
        %v401 = vadd.f32 0.0, %v400
        %402 = vmatmul.f32.gmra.mxu0 %v333
        %v403 = vpop.f32.mrf.mxu0
        %v404 = vadd.f32 0.0, %v403
        %405 = vdwg.mxu0
        %vm406 = vcmask 130048
        %v408 = vsel %vm406, %v358, 0
        %v411 = vsel %vm406, %v378, 0
        %413 = vmatpush.xpose.msra.mxu0 0.0
        %414 = vmatpush.xpose.msra.mxu0 0.0
        %415 = vmatpush.xpose.msra.mxu0 0.0
        %416 = vmatpush.xpose.msra.mxu0 0.0
        %417 = vmatpush.xpose.msra.mxu0 0.0
        %418 = vmatpush.xpose.msra.mxu0 0.0
        %419 = vmatpush.xpose.msra.mxu0 0.0
        %420 = vmatpush.xpose.msra.mxu0 0.0
        %421 = vmatpush.xpose.msra.mxu0 0.0
        %422 = vmatpush.xpose.msra.mxu0 0.0
        %423 = vmatpush.xpose.msra.mxu0 0.0
        %424 = vmatpush.xpose.msra.mxu0 0.0
        %425 = vmatpush.xpose.msra.mxu0 0.0
        %426 = vmatpush.xpose.msra.mxu0 0.0
        %427 = vmatpush.xpose.msra.mxu0 0.0
        %428 = vmatpush.xpose.msra.mxu0 %v411
        %429 = vmatmul.f32.gmra.mxu0 %v408
        %v430 = vpop.f32.mrf.mxu0
        %v431 = vadd.f32 0.0, %v430
        %432 = vdwg.mxu0
        %v434 = vsel %vm406, %v359, 0
        %v437 = vsel %vm406, %v381, 0
        %439 = vmatpush.xpose.msra.mxu0 0.0
        %440 = vmatpush.xpose.msra.mxu0 0.0
        %441 = vmatpush.xpose.msra.mxu0 0.0
        %442 = vmatpush.xpose.msra.mxu0 0.0
        %443 = vmatpush.xpose.msra.mxu0 0.0
        %444 = vmatpush.xpose.msra.mxu0 0.0
        %445 = vmatpush.xpose.msra.mxu0 0.0
        %446 = vmatpush.xpose.msra.mxu0 0.0
        %447 = vmatpush.xpose.msra.mxu0 0.0
        %448 = vmatpush.xpose.msra.mxu0 0.0
        %449 = vmatpush.xpose.msra.mxu0 0.0
        %450 = vmatpush.xpose.msra.mxu0 0.0
        %451 = vmatpush.xpose.msra.mxu0 0.0
        %452 = vmatpush.xpose.msra.mxu0 0.0
        %453 = vmatpush.xpose.msra.mxu0 0.0
        %454 = vmatpush.xpose.msra.mxu0 %v437
        %455 = vmatmul.f32.gmra.mxu0 %v434
        %v456 = vpop.f32.mrf.mxu0
        %v457 = vadd.f32 0.0, %v456
        %458 = vdwg.mxu0
        %v459 = vlaneseq
        %v460 = vshrl.u32 %v459, 7
        %v461 = vlaneseq
        %v462 = vand.u32 %v461, 127
        %v463 = vadd.s32 %v460, 1
        %vm464 = vcmp.le.s32.totalorder %v462, %v463
        %v465 = vsel %vm464, 1, 0
        %vm466 = vcmp.eq.s32.totalorder %v465, 1
        %v467 = vsel %vm466, -inf, %v431
        %v468 = vsel %vm466, -inf, %v457
        %vm469 = vcmask 64512
        %v470 = vsel %vm469, %v467, -inf
        %471 = vmax.xlane.f32.xlu0 %v470
        %v472 = vpop.xlane.xlu0 %471
        %v473 = vsel %vm469, %v468, -inf
        %474 = vmax.xlane.f32.xlu0 %v473
        %v475 = vpop.xlane.xlu0 %474
        %v476 = vsub.f32 %v467, %v472
        %v477 = vsub.f32 %v468, %v475
        %v478 = vmul.f32 %v476, 1.442695
        %v479 = vpow.pop %v478
        %v480 = vmul.f32 %v477, 1.442695
        %v481 = vpow.pop %v480
        %v482 = vsel %vm469, %v479, 0.0
        %483 = vadd.xlane.f32.xlu0 %v482
        %v484 = vpop.xlane.xlu0 %483
        %v485 = vsel %vm469, %v481, 0.0
        %486 = vadd.xlane.f32.xlu0 %v485
        %v487 = vpop.xlane.xlu0 %486
        %v488 = vrcp.pop %v484
        %v489 = vmul.f32 %v484, %v488
        %v490 = vsub.f32 1.0, %v489
        %v491 = vmul.f32 %v488, %v490
        %v492 = vadd.f32 %v488, %v491
        %vm493 = vweird.f32 %v484
        %vm494 = vweird.f32 %v488
        %vm495 = vmor %vm493, %vm494
        %v496 = vsel %vm495, %v488, %v492
        %v497 = vand.u32 2147483647, %v484
        %vm498 = vcmp.eq.f32.partialorder %v497, 8.507059e+37
        %v499 = vand.u32 %v484, 2147483648
        %v500 = vor.u32 1.1754944e-38, %v499
        %v501 = vsel %vm498, %v500, %v496
        %v502 = vmul.f32 1.0, %v501
        %v503 = vrcp.pop %v487
        %v504 = vmul.f32 %v487, %v503
        %v505 = vsub.f32 1.0, %v504
        %v506 = vmul.f32 %v503, %v505
        %v507 = vadd.f32 %v503, %v506
        %vm508 = vweird.f32 %v487
        %vm509 = vweird.f32 %v503
        %vm510 = vmor %vm508, %vm509
        %v511 = vsel %vm510, %v503, %v507
        %v512 = vand.u32 2147483647, %v487
        %vm513 = vcmp.eq.f32.partialorder %v512, 8.507059e+37
        %v514 = vand.u32 %v487, 2147483648
        %v515 = vor.u32 1.1754944e-38, %v514
        %v516 = vsel %vm513, %v515, %v511
        %v517 = vmul.f32 1.0, %v516
        %v518 = vmul.f32 %v479, %v502
        %v519 = vmul.f32 %v481, %v517
        %520 = vst.msk [vmem:[%s290] sm:$0xff] %vm469, %v518
        %521 = vst.msk [vmem:[%s290 + $0x8] sm:$0xff] %vm469, %v519
        %v523 = vsel %vm469, %v518, 0
        %525 = vmatpush.msra.mxu0 0.0
        %526 = vmatpush.msra.mxu0 0.0
        %527 = vmatpush.msra.mxu0 0.0
        %528 = vmatpush.msra.mxu0 0.0
        %529 = vmatpush.msra.mxu0 0.0
        %530 = vmatpush.msra.mxu0 0.0
        %531 = vmatpush.msra.mxu0 0.0
        %532 = vmatpush.msra.mxu0 0.0
        %533 = vmatpush.msra.mxu0 0.0
        %534 = vmatpush.msra.mxu0 0.0
        %535 = vmatpush.msra.mxu0 0.0
        %536 = vmatpush.msra.mxu0 0.0
        %537 = vmatpush.msra.mxu0 0.0
        %538 = vmatpush.msra.mxu0 0.0
        %539 = vmatpush.msra.mxu0 0.0
        %540 = vmatpush.msra.mxu0 %v401
        %541 = vmatmul.f32.gmra.mxu0 %v523
        %v542 = vpop.f32.mrf.mxu0
        %v543 = vadd.f32 0.0, %v542
        %544 = vdwg.mxu0
        %v546 = vsel %vm469, %v519, 0
        %548 = vmatpush.msra.mxu0 0.0
        %549 = vmatpush.msra.mxu0 0.0
        %550 = vmatpush.msra.mxu0 0.0
        %551 = vmatpush.msra.mxu0 0.0
        %552 = vmatpush.msra.mxu0 0.0
        %553 = vmatpush.msra.mxu0 0.0
        %554 = vmatpush.msra.mxu0 0.0
        %555 = vmatpush.msra.mxu0 0.0
        %556 = vmatpush.msra.mxu0 0.0
        %557 = vmatpush.msra.mxu0 0.0
        %558 = vmatpush.msra.mxu0 0.0
        %559 = vmatpush.msra.mxu0 0.0
        %560 = vmatpush.msra.mxu0 0.0
        %561 = vmatpush.msra.mxu0 0.0
        %562 = vmatpush.msra.mxu0 0.0
        %563 = vmatpush.msra.mxu0 %v404
        %564 = vmatmul.f32.gmra.mxu0 %v546
        %v565 = vpop.f32.mrf.mxu0
        %v566 = vadd.f32 0.0, %v565
        %567 = vdwg.mxu0
        %568 = vst.msk [vmem:[%s283] sm:$0xff] %vm406, %v543
        %569 = vst.msk [vmem:[%s283 + $0x8] sm:$0xff] %vm406, %v566
        %s570 = sand.u32 %s149, 1
        %s571 = scalar_lea.sflag [#allocation3], %s570
        %s572 = sand.u32 %s149, 1
        %s573 = smul.addr %s572, 16
        %s574 = scalar_lea.vmem [#allocation2], %s573
        %s575 = sand.u32 %s177, 1
        %s576 = scalar_lea.sflag [#allocation5], %s575
        %s577 = sand.u32 %s177, 1
        %s578 = smul.addr %s577, 16
        %s579 = scalar_lea.vmem [#allocation4], %s578
        // Predicated region
        $region37: #{tpu_custom_call.1} parent=35 // pred_check
          %p580 = pneg %p159
        $region38: #{tpu_custom_call.1} parent=35 // pred_check_branch
          %582 = sbr.rel (%p580) target = $region40
        $region39: #{tpu_custom_call.1} parent=35 // pred_region
          %s583 = smul.u32 2, %s27
          %585 = vsyncadd %s571, 0
          %s586 = smul.addr %s583, 4
          %s587 = sadd.s32 %s28, %s586
          %s588 = smul.addr %s587, 8
          %s589 = scalar_lea.hbm %s4, %s588
          %s590 = sshll.u32 %s574, 4
          %s591 = int_to_ptr.vmem [resolvable:$true] %s590
          %s592 = sshll.u32 %s589, 4
          %s593 = int_to_ptr.hbm [resolvable:$true] %s592
          %598 = dma.vmem_to_hbm [thread:$0]  %s591, 256, %s593, %s571, 128, 512, 8
        $region40: #{tpu_custom_call.1} parent=35 // pred_fallthru
          _
        // Predicated region
        $region41: #{tpu_custom_call.1} parent=35 // pred_check
          %p599 = pneg %p187
        $region42: #{tpu_custom_call.1} parent=35 // pred_check_branch
          %601 = sbr.rel (%p599) target = $region44
        $region43: #{tpu_custom_call.1} parent=35 // pred_region
          %s602 = smul.u32 2, %s27
          %604 = vsyncadd %s576, 0
          %s605 = smul.addr %s602, 4
          %s606 = sadd.s32 %s28, %s605
          %s607 = smul.addr %s606, 8
          %s608 = scalar_lea.hbm %s5, %s607
          %s609 = sshll.u32 %s579, 4
          %s610 = int_to_ptr.vmem [resolvable:$true] %s609
          %s611 = sshll.u32 %s608, 4
          %s612 = int_to_ptr.hbm [resolvable:$true] %s611
          %617 = dma.vmem_to_hbm [thread:$0]  %s610, 256, %s612, %s576, 128, 512, 8
        $region44: #{tpu_custom_call.1} parent=35 // pred_fallthru
          _
      $region36: #{tpu_custom_call.1} parent=5 // pred_fallthru
        _
      %p618 = scmp.le.s32.totalorder 2, %s18
      // Predicated region
      $region45: #{tpu_custom_call.1} parent=5 // pred_check
        %p619 = pneg %p618
      $region46: #{tpu_custom_call.1} parent=5 // pred_check_branch
        %621 = sbr.rel (%p619) target = $region48
      $region47: #{tpu_custom_call.1} parent=5 // pred_region
        %s622 = ssub.s32 %s18, 2
        // Predicated region
        $region49: #{tpu_custom_call.1} parent=47 // pred_check
          %p623 = pneg %p165
        $region50: #{tpu_custom_call.1} parent=47 // pred_check_branch
          %625 = sbr.rel (%p623) target = $region52
        $region51: #{tpu_custom_call.1} parent=47 // pred_region
          %s626 = sand.u32 %s150, 1
          %s627 = scalar_lea.sflag [#allocation3], %s626
          %s628 = sand.u32 %s150, 1
          %s629 = smul.addr %s628, 16
          %s630 = scalar_lea.vmem [#allocation2], %s629
          %632 = dma.done %s627, 256
        $region52: #{tpu_custom_call.1} parent=47 // pred_fallthru
          _
        // Predicated region
        $region53: #{tpu_custom_call.1} parent=47 // pred_check
          %p633 = pneg %p193
        $region54: #{tpu_custom_call.1} parent=47 // pred_check_branch
          %635 = sbr.rel (%p633) target = $region56
        $region55: #{tpu_custom_call.1} parent=47 // pred_region
          %s636 = sand.u32 %s178, 1
          %s637 = scalar_lea.sflag [#allocation5], %s636
          %s638 = sand.u32 %s178, 1
          %s639 = smul.addr %s638, 16
          %s640 = scalar_lea.vmem [#allocation4], %s639
          %642 = dma.done %s637, 256
        $region56: #{tpu_custom_call.1} parent=47 // pred_fallthru
          _
      $region48: #{tpu_custom_call.1} parent=5 // pred_fallthru
        _
    $region6: #{tpu_custom_call.1} parent=1 // loop_footer
      %s22 = sadd.s32 1, %s18
    $region7: #{tpu_custom_call.1} parent=1 // loop_footer_branch
      %17 = sbr.rel target = $region3
    $region8: #{tpu_custom_call.1} parent=1 // loop_exit
      _
    %643 = vsyncpa [#allocation3], 1
    %s644 = scalar_lea.sflag [#allocation3], 1
    %645 = vsyncpa %s644, 1
    %646 = vsyncpa [#allocation5], 1
    %s647 = scalar_lea.sflag [#allocation5], 1
    %648 = vsyncpa %s647, 1

</llo_original>
